<compile_context>
chip_gen: v5e
topology: v5e:2x2
jax: 0.10.0
libtpu: 0.0.40
codegen_flags: <defaults>
</compile_context>

<pallas_src>
import functools

import jax
import jax.numpy as jnp
from jax.experimental import pallas as pl
from jax.experimental.pallas import tpu as pltpu


def _round_up(x, m):
    return ((x + m - 1) // m) * m


def _cdiv(a, b):
    return -(-a // b)


def _vmem_capacity_bytes():
    """Physical VMEM per TensorCore, with a v7x-safe fallback."""
    try:
        info = pltpu.get_tpu_info()
        cap = getattr(info, "vmem_capacity_bytes", None)
        if cap:
            return int(cap)
    except Exception:
        pass
    return 64 * 1024 * 1024


def _encoder_kernel(x_ref, sx_ref, wh_ref, wc_ref, wx_w_ref, wh_w_ref, b_ref,
                    out_w_ref, out_e_ref, h_ref, c_ref, *, Hp):
    t = pl.program_id(1)

    # Reset the recurrent state at the start of each batch tile's time loop.
    @pl.when(t == 0)
    def _():
        h_ref[...] = jnp.zeros_like(h_ref)
        c_ref[...] = jnp.zeros_like(c_ref)

    x_t = x_ref[0]                     # (TB, Ip)   current timestep slab
    h = h_ref[...]                     # (TB, Hp)   f32 recurrent state
    c = c_ref[...]

    # ---- input attention (VPU multiply + lane reduce; no MXU) -------------
    # sx already contains sum_t wx[t]*x[t] + attention bias + pad-lane mask.
    s_hc = jnp.sum(h * wh_ref[...] + c * wc_ref[...], axis=-1, keepdims=True)
    scores = sx_ref[...] + s_hc                                   # (TB, Ip)
    m = jnp.max(scores, axis=-1, keepdims=True)
    e = jnp.exp(scores - m)
    inv_denom = pl.reciprocal(jnp.sum(e, axis=-1, keepdims=True), approx=True)
    weighted = (e * inv_denom) * x_t                              # (TB, Ip)

    # ---- one LSTM step: two bf16 MXU dots (gate order i, f, g, o) ---------
    gates = (jnp.dot(weighted.astype(jnp.bfloat16), wx_w_ref[...],
                     preferred_element_type=jnp.float32)
             + jnp.dot(h.astype(jnp.bfloat16), wh_w_ref[...],
                       preferred_element_type=jnp.float32)
             + b_ref[...])                                        # (TB, 4*Hp)
    i_g = jax.nn.sigmoid(gates[:, 0 * Hp:1 * Hp])                 # 128-aligned slices
    f_g = jax.nn.sigmoid(gates[:, 1 * Hp:2 * Hp])
    g_g = jnp.tanh(gates[:, 2 * Hp:3 * Hp])
    o_g = jax.nn.sigmoid(gates[:, 3 * Hp:4 * Hp])
    c_new = f_g * c + i_g * g_g
    h_new = o_g * jnp.tanh(c_new)

    h_ref[...] = h_new
    c_ref[...] = c_new
    out_w_ref[0] = weighted                                       # (TB, Ip) slab
    out_e_ref[0] = h_new                                          # (TB, Hp) slab
    # NOTE: torch.autograd.Variable / lstm.flatten_parameters() are no-ops here.


def encoder_forward(x, attn_w, attn_b, w_ih, w_hh, b_ih, b_hh):
    """x: (B, T, I) f32.  attn_w: (1, 2H+T), attn_b: (1,),
    w_ih: (4H, I), w_hh: (4H, H), b_ih/b_hh: (4H,).
    Returns (input_weighted (B,T,I), input_encoded (B,T,H))."""
    B, T, I = x.shape
    H = w_hh.shape[1]
    Ip = _round_up(I, 128)
    Hp = _round_up(H, 128)

    # ---- parameter plumbing (plain JAX glue) -------------------------------
    wh = jnp.zeros((1, Hp), jnp.float32).at[0, :H].set(attn_w[0, :H])
    wc = jnp.zeros((1, Hp), jnp.float32).at[0, :H].set(attn_w[0, H:2 * H])
    wx = attn_w[0, 2 * H:2 * H + T].astype(jnp.float32)             # (T,)
    b_attn = attn_b.reshape(()).astype(jnp.float32)

    # Split, gate-padded LSTM weights (each gate on a 128-lane-aligned block),
    # pre-cast to bf16 for the MXU.  Padded rows/columns are zero.
    w_x = jnp.zeros((Ip, 4 * Hp), jnp.float32)
    w_h = jnp.zeros((Hp, 4 * Hp), jnp.float32)
    b_lstm = jnp.zeros((1, 4 * Hp), jnp.float32)
    for k in range(4):
        w_x = w_x.at[:I, k * Hp:k * Hp + H].set(w_ih[k * H:(k + 1) * H, :].T)
        w_h = w_h.at[:H, k * Hp:k * Hp + H].set(w_hh[k * H:(k + 1) * H, :].T)
        b_lstm = b_lstm.at[0, k * Hp:k * Hp + H].set(
            b_ih[k * H:(k + 1) * H] + b_hh[k * H:(k + 1) * H])
    w_x_bf16 = w_x.astype(jnp.bfloat16)
    w_h_bf16 = w_h.astype(jnp.bfloat16)

    # ---- per-generation VMEM budget ----------------------------------------
    vmem_cap = _vmem_capacity_bytes()                 # 64 MiB v7x, 128 MiB v5e/v6e
    vmem_limit = min(vmem_cap * 3 // 4, 100 * 1024 * 1024)
    # Conservative bytes per batch row: double-buffered x / s_x / out blocks,
    # f32 h/c scratch, plus a generous allowance for in-kernel temporaries
    # (gates, activations, attention temps, bf16 casts).
    per_row = (2 * 4 * (3 * Ip + Hp)          # pipelined blocks (2 buffers each)
               + 2 * 4 * Hp                   # h, c scratch
               + 4 * (8 * Hp + 4 * Ip))       # temporaries
    fixed = 2 * 2 * (Ip + Hp) * 4 * Hp + 256 * 1024   # double-buffered bf16 weights + misc
    tile_budget = max(vmem_limit - fixed, vmem_limit // 2)

    # ---- batch tiling -------------------------------------------------------
    if B <= 8:
        TB = 8                                          # 8-row pad: unmasked vld/vst
    else:
        tb_vmem = max(8, (tile_budget // per_row) // 8 * 8)
        tb_half = _round_up(_cdiv(B, 2), 8)             # >= 2 tiles => both TCs on v7x
        TB = min(tb_vmem, tb_half)
        if TB >= 256:
            TB = (TB // 128) * 128                      # 128-aligned M for the MXU
    n_tiles = _cdiv(B, TB)
    Bp = n_tiles * TB

    # Time-major, lane- and batch-padded input: (T, Bp, Ip).
    x_tm = jnp.zeros((T, Bp, Ip), jnp.float32).at[:, :B, :I].set(
        jnp.transpose(x, (1, 0, 2)))

    # s_x[b,i] = sum_t wx[t]*x[t,b,i] + attn bias + pad-lane mask (constant over t).
    pad_mask = jnp.where(jnp.arange(Ip) < I, 0.0, -1e30).astype(jnp.float32)
    s_x = jnp.sum(x_tm * wx[:, None, None], axis=0) + b_attn + pad_mask[None, :]

    kernel = functools.partial(_encoder_kernel, Hp=Hp)

    out_w, out_e = pl.pallas_call(
        kernel,
        grid=(n_tiles, T),
        in_specs=[
            pl.BlockSpec((1, TB, Ip), lambda b, t: (t, b, 0)),       # x (time-major)
            pl.BlockSpec((TB, Ip), lambda b, t: (b, 0)),             # s_x (t-invariant)
            pl.BlockSpec((1, Hp), lambda b, t: (0, 0)),              # wh
            pl.BlockSpec((1, Hp), lambda b, t: (0, 0)),              # wc
            pl.BlockSpec((Ip, 4 * Hp), lambda b, t: (0, 0)),         # Wx (bf16)
            pl.BlockSpec((Hp, 4 * Hp), lambda b, t: (0, 0)),         # Wh (bf16)
            pl.BlockSpec((1, 4 * Hp), lambda b, t: (0, 0)),          # gate bias
        ],
        out_specs=(pl.BlockSpec((1, TB, Ip), lambda b, t: (t, b, 0)),
                   pl.BlockSpec((1, TB, Hp), lambda b, t: (t, b, 0))),
        out_shape=(jax.ShapeDtypeStruct((T, Bp, Ip), jnp.float32),
                   jax.ShapeDtypeStruct((T, Bp, Hp), jnp.float32)),
        scratch_shapes=[pltpu.VMEM((TB, Hp), jnp.float32),           # h carry
                        pltpu.VMEM((TB, Hp), jnp.float32)],          # c carry
        compiler_params=pltpu.CompilerParams(
            dimension_semantics=("parallel", "arbitrary"),
            vmem_limit_bytes=int(vmem_limit)),
    )(x_tm, s_x, wh, wc, w_x_bf16, w_h_bf16, b_lstm)

    input_weighted = jnp.transpose(out_w, (1, 0, 2))[:B, :, :I]
    input_encoded = jnp.transpose(out_e, (1, 0, 2))[:B, :, :H]
    return input_weighted, input_encoded


def encoder_reference(x, attn_w, attn_b, w_ih, w_hh, b_ih, b_hh):
    """Pure-JAX mirror of the PyTorch forward, for correctness checking."""
    B, T, I = x.shape
    H = w_hh.shape[1]
    h = jnp.zeros((B, H), jnp.float32)
    c = jnp.zeros((B, H), jnp.float32)
    iw = []
    ie = []
    for t in range(T):
        feat = jnp.concatenate(
            [jnp.broadcast_to(h[:, None, :], (B, I, H)),
             jnp.broadcast_to(c[:, None, :], (B, I, H)),
             jnp.transpose(x, (0, 2, 1))], axis=2)
        scores = (feat.reshape(-1, 2 * H + T) @ attn_w.T + attn_b).reshape(B, I)
        attn = jax.nn.softmax(scores, axis=1)
        weighted = attn * x[:, t, :]
        gates = weighted @ w_ih.T + h @ w_hh.T + b_ih + b_hh
        i_g = jax.nn.sigmoid(gates[:, 0 * H:1 * H])
        f_g = jax.nn.sigmoid(gates[:, 1 * H:2 * H])
        g_g = jnp.tanh(gates[:, 2 * H:3 * H])
        o_g = jax.nn.sigmoid(gates[:, 3 * H:4 * H])
        c = f_g * c + i_g * g_g
        h = o_g * jnp.tanh(c)
        iw.append(weighted)
        ie.append(h)
    return jnp.stack(iw, axis=1), jnp.stack(ie, axis=1)


if __name__ == "__main__":
    B, T, I, H = 2, 10, 8, 16          # batch, time steps, input_size, hidden_size

    key = jax.random.PRNGKey(0)
    ks = jax.random.split(key, 7)
    bound = 1.0 / (H ** 0.5)
    x = jax.random.normal(ks[0], (B, T, I), jnp.float32)
    attn_w = jax.random.uniform(ks[1], (1, 2 * H + T), jnp.float32, -0.2, 0.2)
    attn_b = jax.random.uniform(ks[2], (1,), jnp.float32, -0.2, 0.2)
    w_ih = jax.random.uniform(ks[3], (4 * H, I), jnp.float32, -bound, bound)
    w_hh = jax.random.uniform(ks[4], (4 * H, H), jnp.float32, -bound, bound)
    b_ih = jax.random.uniform(ks[5], (4 * H,), jnp.float32, -bound, bound)
    b_hh = jax.random.uniform(ks[6], (4 * H,), jnp.float32, -bound, bound)

    iw, ie = encoder_forward(x, attn_w, attn_b, w_ih, w_hh, b_ih, b_hh)
    jax.block_until_ready((iw, ie))

    iw_ref, ie_ref = encoder_reference(x, attn_w, attn_b, w_ih, w_hh, b_ih, b_hh)
    assert iw.shape == (B, T, I) and ie.shape == (B, T, H)
    # Tolerance relaxed for the bf16 gate matmul + approx softmax reciprocal.
    assert jnp.allclose(iw, iw_ref, rtol=2e-2, atol=2e-2)
    assert jnp.allclose(ie, ie_ref, rtol=2e-2, atol=2e-2)

    print("KERNEL_OK")
</pallas_src>

<mosaic_0001>
module attributes {stable_mosaic.version = 11 : i64} {
  func.func @_encoder_kernel(%arg0: i32, %arg1: i32, %arg2: memref<1x8x128xf32, #tpu.memory_space<vmem>>, %arg3: memref<8x128xf32, #tpu.memory_space<vmem>>, %arg4: memref<1x128xf32, #tpu.memory_space<vmem>>, %arg5: memref<1x128xf32, #tpu.memory_space<vmem>>, %arg6: memref<128x512xbf16, #tpu.memory_space<vmem>>, %arg7: memref<128x512xbf16, #tpu.memory_space<vmem>>, %arg8: memref<1x512xf32, #tpu.memory_space<vmem>>, %arg9: memref<1x8x128xf32, #tpu.memory_space<vmem>>, %arg10: memref<1x8x128xf32, #tpu.memory_space<vmem>>, %arg11: memref<8x128xf32, #tpu.memory_space<vmem>>, %arg12: memref<8x128xf32, #tpu.memory_space<vmem>>) attributes {dimension_semantics = [#tpu.dimension_semantics<parallel>, #tpu.dimension_semantics<arbitrary>], iteration_bounds = array<i64: 1, 10>, scalar_prefetch = 0 : i64, scratch_operands = 2 : i64, tpu.core_type = #tpu.core_type<tc>, window_params = [{transform_indices = @transform_0, window_bounds = array<i64: 1, 8, 128>}, {transform_indices = @transform_1, window_bounds = array<i64: 8, 128>}, {pipeline_mode = #tpu.pipeline_mode<synchronous>, transform_indices = @transform_2, window_bounds = array<i64: 1, 128>}, {pipeline_mode = #tpu.pipeline_mode<synchronous>, transform_indices = @transform_3, window_bounds = array<i64: 1, 128>}, {pipeline_mode = #tpu.pipeline_mode<synchronous>, transform_indices = @transform_4, window_bounds = array<i64: 128, 512>}, {pipeline_mode = #tpu.pipeline_mode<synchronous>, transform_indices = @transform_5, window_bounds = array<i64: 128, 512>}, {pipeline_mode = #tpu.pipeline_mode<synchronous>, transform_indices = @transform_6, window_bounds = array<i64: 1, 512>}, {transform_indices = @transform_7, window_bounds = array<i64: 1, 8, 128>}, {transform_indices = @transform_8, window_bounds = array<i64: 1, 8, 128>}]} {
    %c0_i32 = arith.constant 0 : i32
    %0 = arith.cmpi eq, %arg1, %c0_i32 : i32
    %1 = arith.extui %0 : i1 to i32
    %c0_i32_0 = arith.constant 0 : i32
    %2 = arith.cmpi ne, %1, %c0_i32_0 : i32
    scf.if %2 {
      %cst_36 = arith.constant 0.000000e+00 : f32
      %73 = vector.broadcast %cst_36 : f32 to vector<8x128xf32>
      %c0_37 = arith.constant 0 : index
      %c0_38 = arith.constant 0 : index
      %74 = vector.load %arg11[%c0_37, %c0_38] : memref<8x128xf32, #tpu.memory_space<vmem>>, vector<8x128xf32>
      tpu.vector_store %arg11[%c0_37, %c0_38], %73 {strides = array<i32>} : memref<8x128xf32, #tpu.memory_space<vmem>>, vector<8x128xf32>,
      %cst_39 = arith.constant 0.000000e+00 : f32
      %75 = vector.broadcast %cst_39 : f32 to vector<8x128xf32>
      %c0_40 = arith.constant 0 : index
      %c0_41 = arith.constant 0 : index
      %76 = vector.load %arg12[%c0_40, %c0_41] : memref<8x128xf32, #tpu.memory_space<vmem>>, vector<8x128xf32>
      tpu.vector_store %arg12[%c0_40, %c0_41], %75 {strides = array<i32>} : memref<8x128xf32, #tpu.memory_space<vmem>>, vector<8x128xf32>,
    } else {
    }
    %c0 = arith.constant 0 : index
    %c0_1 = arith.constant 0 : index
    %c0_2 = arith.constant 0 : index
    %3 = vector.load %arg2[%c0, %c0_1, %c0_2] : memref<1x8x128xf32, #tpu.memory_space<vmem>>, vector<1x8x128xf32>
    %4 = vector.shape_cast %3 : vector<1x8x128xf32> to vector<8x128xf32>
    %c0_3 = arith.constant 0 : index
    %c0_4 = arith.constant 0 : index
    %5 = vector.load %arg11[%c0_3, %c0_4] : memref<8x128xf32, #tpu.memory_space<vmem>>, vector<8x128xf32>
    %c0_5 = arith.constant 0 : index
    %c0_6 = arith.constant 0 : index
    %6 = vector.load %arg12[%c0_5, %c0_6] : memref<8x128xf32, #tpu.memory_space<vmem>>, vector<8x128xf32>
    %c0_7 = arith.constant 0 : index
    %c0_8 = arith.constant 0 : index
    %7 = vector.load %arg4[%c0_7, %c0_8] : memref<1x128xf32, #tpu.memory_space<vmem>>, vector<1x128xf32>
    %8 = vector.broadcast %7 : vector<1x128xf32> to vector<8x128xf32>
    %9 = arith.mulf %5, %8 : vector<8x128xf32>
    %c0_9 = arith.constant 0 : index
    %c0_10 = arith.constant 0 : index
    %10 = vector.load %arg5[%c0_9, %c0_10] : memref<1x128xf32, #tpu.memory_space<vmem>>, vector<1x128xf32>
    %11 = vector.broadcast %10 : vector<1x128xf32> to vector<8x128xf32>
    %12 = arith.mulf %6, %11 : vector<8x128xf32>
    %13 = arith.addf %9, %12 : vector<8x128xf32>
    %cst = arith.constant dense<0.000000e+00> : vector<8xf32>
    %14 = vector.multi_reduction <add>, %13, %cst [1] : vector<8x128xf32> to vector<8xf32>
    %15 = vector.shape_cast %14 : vector<8xf32> to vector<8x1xf32>
    %c0_11 = arith.constant 0 : index
    %c0_12 = arith.constant 0 : index
    %16 = vector.load %arg3[%c0_11, %c0_12] : memref<8x128xf32, #tpu.memory_space<vmem>>, vector<8x128xf32>
    %17 = vector.broadcast %15 : vector<8x1xf32> to vector<8x128xf32>
    %18 = arith.addf %16, %17 : vector<8x128xf32>
    %cst_13 = arith.constant dense<0xFF800000> : vector<8xf32>
    %19 = vector.multi_reduction <maximumf>, %18, %cst_13 [1] : vector<8x128xf32> to vector<8xf32>
    %20 = vector.shape_cast %19 : vector<8xf32> to vector<8x1xf32>
    %21 = vector.broadcast %20 : vector<8x1xf32> to vector<8x128xf32>
    %22 = arith.subf %18, %21 : vector<8x128xf32>
    %23 = math.exp %22 : vector<8x128xf32>
    %cst_14 = arith.constant dense<0.000000e+00> : vector<8xf32>
    %24 = vector.multi_reduction <add>, %23, %cst_14 [1] : vector<8x128xf32> to vector<8xf32>
    %25 = vector.shape_cast %24 : vector<8xf32> to vector<8x1xf32>
    %26 = tpu.reciprocal %25 {approx = true} : vector<8x1xf32> -> vector<8x1xf32>
    %27 = vector.broadcast %26 : vector<8x1xf32> to vector<8x128xf32>
    %28 = arith.mulf %23, %27 : vector<8x128xf32>
    %29 = arith.mulf %28, %4 : vector<8x128xf32>
    %30 = arith.truncf %29 : vector<8x128xf32> to vector<8x128xbf16>
    %c0_15 = arith.constant 0 : index
    %c0_16 = arith.constant 0 : index
    %31 = vector.load %arg6[%c0_15, %c0_16] : memref<128x512xbf16, #tpu.memory_space<vmem>>, vector<128x512xbf16>
    %cst_17 = arith.constant dense<0.000000e+00> : vector<8x512xf32>
    %32 = tpu.matmul %30, %31, %cst_17 {dimension_numbers = #tpu.dot_dimension_numbers<[1], [0], [0], [1], [0, 0, 1, 1], [], []>} : vector<8x128xbf16>, vector<128x512xbf16>, vector<8x512xf32> -> vector<8x512xf32>
    %33 = arith.truncf %5 : vector<8x128xf32> to vector<8x128xbf16>
    %c0_18 = arith.constant 0 : index
    %c0_19 = arith.constant 0 : index
    %34 = vector.load %arg7[%c0_18, %c0_19] : memref<128x512xbf16, #tpu.memory_space<vmem>>, vector<128x512xbf16>
    %cst_20 = arith.constant dense<0.000000e+00> : vector<8x512xf32>
    %35 = tpu.matmul %33, %34, %cst_20 {dimension_numbers = #tpu.dot_dimension_numbers<[1], [0], [0], [1], [0, 0, 1, 1], [], []>} : vector<8x128xbf16>, vector<128x512xbf16>, vector<8x512xf32> -> vector<8x512xf32>
    %36 = arith.addf %32, %35 : vector<8x512xf32>
    %c0_21 = arith.constant 0 : index
    %c0_22 = arith.constant 0 : index
    %37 = vector.load %arg8[%c0_21, %c0_22] : memref<1x512xf32, #tpu.memory_space<vmem>>, vector<1x512xf32>
    %38 = vector.broadcast %37 : vector<1x512xf32> to vector<8x512xf32>
    %39 = arith.addf %36, %38 : vector<8x512xf32>
    %40 = vector.extract_strided_slice %39 {offsets = [0, 0], sizes = [8, 128], strides = [1, 1]} : vector<8x512xf32> to vector<8x128xf32>
    %41 = arith.negf %40 : vector<8x128xf32>
    %42 = math.exp %41 : vector<8x128xf32>
    %cst_23 = arith.constant 1.000000e+00 : f32
    %43 = vector.broadcast %cst_23 : f32 to vector<8x128xf32>
    %44 = arith.addf %43, %42 : vector<8x128xf32>
    %45 = arith.divf %43, %44 : vector<8x128xf32>
    %46 = vector.extract_strided_slice %39 {offsets = [0, 128], sizes = [8, 128], strides = [1, 1]} : vector<8x512xf32> to vector<8x128xf32>
    %47 = arith.negf %46 : vector<8x128xf32>
    %48 = math.exp %47 : vector<8x128xf32>
    %cst_24 = arith.constant 1.000000e+00 : f32
    %49 = vector.broadcast %cst_24 : f32 to vector<8x128xf32>
    %50 = arith.addf %49, %48 : vector<8x128xf32>
    %51 = arith.divf %49, %50 : vector<8x128xf32>
    %52 = vector.extract_strided_slice %39 {offsets = [0, 256], sizes = [8, 128], strides = [1, 1]} : vector<8x512xf32> to vector<8x128xf32>
    %53 = math.tanh %52 : vector<8x128xf32>
    %54 = vector.extract_strided_slice %39 {offsets = [0, 384], sizes = [8, 128], strides = [1, 1]} : vector<8x512xf32> to vector<8x128xf32>
    %55 = arith.negf %54 : vector<8x128xf32>
    %56 = math.exp %55 : vector<8x128xf32>
    %cst_25 = arith.constant 1.000000e+00 : f32
    %57 = vector.broadcast %cst_25 : f32 to vector<8x128xf32>
    %58 = arith.addf %57, %56 : vector<8x128xf32>
    %59 = arith.divf %57, %58 : vector<8x128xf32>
    %60 = arith.mulf %51, %6 : vector<8x128xf32>
    %61 = arith.mulf %45, %53 : vector<8x128xf32>
    %62 = arith.addf %60, %61 : vector<8x128xf32>
    %63 = math.tanh %62 : vector<8x128xf32>
    %64 = arith.mulf %59, %63 : vector<8x128xf32>
    %c0_26 = arith.constant 0 : index
    %c0_27 = arith.constant 0 : index
    %65 = vector.load %arg11[%c0_26, %c0_27] : memref<8x128xf32, #tpu.memory_space<vmem>>, vector<8x128xf32>
    tpu.vector_store %arg11[%c0_26, %c0_27], %64 {strides = array<i32>} : memref<8x128xf32, #tpu.memory_space<vmem>>, vector<8x128xf32>,
    %c0_28 = arith.constant 0 : index
    %c0_29 = arith.constant 0 : index
    %66 = vector.load %arg12[%c0_28, %c0_29] : memref<8x128xf32, #tpu.memory_space<vmem>>, vector<8x128xf32>
    tpu.vector_store %arg12[%c0_28, %c0_29], %62 {strides = array<i32>} : memref<8x128xf32, #tpu.memory_space<vmem>>, vector<8x128xf32>,
    %c0_30 = arith.constant 0 : index
    %c0_31 = arith.constant 0 : index
    %c0_32 = arith.constant 0 : index
    %67 = vector.load %arg9[%c0_30, %c0_31, %c0_32] : memref<1x8x128xf32, #tpu.memory_space<vmem>>, vector<1x8x128xf32>
    %68 = vector.shape_cast %67 : vector<1x8x128xf32> to vector<8x128xf32>
    %69 = vector.shape_cast %29 : vector<8x128xf32> to vector<1x8x128xf32>
    tpu.vector_store %arg9[%c0_30, %c0_31, %c0_32], %69 {strides = array<i32>} : memref<1x8x128xf32, #tpu.memory_space<vmem>>, vector<1x8x128xf32>,
    %c0_33 = arith.constant 0 : index
    %c0_34 = arith.constant 0 : index
    %c0_35 = arith.constant 0 : index
    %70 = vector.load %arg10[%c0_33, %c0_34, %c0_35] : memref<1x8x128xf32, #tpu.memory_space<vmem>>, vector<1x8x128xf32>
    %71 = vector.shape_cast %70 : vector<1x8x128xf32> to vector<8x128xf32>
    %72 = vector.shape_cast %64 : vector<8x128xf32> to vector<1x8x128xf32>
    tpu.vector_store %arg10[%c0_33, %c0_34, %c0_35], %72 {strides = array<i32>} : memref<1x8x128xf32, #tpu.memory_space<vmem>>, vector<1x8x128xf32>,
    return
  }
  func.func @transform_0(%arg0: i32, %arg1: i32) -> (i32, i32, i32) {
    %c0_i32 = arith.constant 0 : i32
    %c0_i32_0 = arith.constant 0 : i32
    return %arg1, %arg0, %c0_i32 : i32, i32, i32
  }
  func.func @transform_1(%arg0: i32, %arg1: i32) -> (i32, i32) {
    %c0_i32 = arith.constant 0 : i32
    %c0_i32_0 = arith.constant 0 : i32
    return %arg0, %c0_i32 : i32, i32
  }
  func.func @transform_2(%arg0: i32, %arg1: i32) -> (i32, i32) {
    %c0_i32 = arith.constant 0 : i32
    %c0_i32_0 = arith.constant 0 : i32
    %c0_i32_1 = arith.constant 0 : i32
    return %c0_i32, %c0_i32_0 : i32, i32
  }
  func.func @transform_3(%arg0: i32, %arg1: i32) -> (i32, i32) {
    %c0_i32 = arith.constant 0 : i32
    %c0_i32_0 = arith.constant 0 : i32
    %c0_i32_1 = arith.constant 0 : i32
    return %c0_i32, %c0_i32_0 : i32, i32
  }
  func.func @transform_4(%arg0: i32, %arg1: i32) -> (i32, i32) {
    %c0_i32 = arith.constant 0 : i32
    %c0_i32_0 = arith.constant 0 : i32
    %c0_i32_1 = arith.constant 0 : i32
    return %c0_i32, %c0_i32_0 : i32, i32
  }
  func.func @transform_5(%arg0: i32, %arg1: i32) -> (i32, i32) {
    %c0_i32 = arith.constant 0 : i32
    %c0_i32_0 = arith.constant 0 : i32
    %c0_i32_1 = arith.constant 0 : i32
    return %c0_i32, %c0_i32_0 : i32, i32
  }
  func.func @transform_6(%arg0: i32, %arg1: i32) -> (i32, i32) {
    %c0_i32 = arith.constant 0 : i32
    %c0_i32_0 = arith.constant 0 : i32
    %c0_i32_1 = arith.constant 0 : i32
    return %c0_i32, %c0_i32_0 : i32, i32
  }
  func.func @transform_7(%arg0: i32, %arg1: i32) -> (i32, i32, i32) {
    %c0_i32 = arith.constant 0 : i32
    %c0_i32_0 = arith.constant 0 : i32
    return %arg1, %arg0, %c0_i32 : i32, i32, i32
  }
  func.func @transform_8(%arg0: i32, %arg1: i32) -> (i32, i32, i32) {
    %c0_i32 = arith.constant 0 : i32
    %c0_i32_0 = arith.constant 0 : i32
    return %arg1, %arg0, %c0_i32 : i32, i32, i32
  }
}

</mosaic_0001>

<llo_original>
// kernel: tpu_custom_call.1
$region0: #{tpu_custom_call.1}
  #allocation0 [shape = 'u32[]', space=smem, size = 0x4, offset = 0x4, fixed_abs, tag = 'smem constant byte address 0x4 - core index']
  #allocation1 [shape = 'u32[72,128]{1,0:T(1,128)}', space=vmem, size = 0x9000, scoped, tag = 'internal scratch']
  #allocation2 [shape = 'f32[8,128]{1,0:T(8,128)}', space=vmem, size = 0x1000, scoped, tag = 'scratch operand']
  #allocation3 [shape = 'f32[8,128]{1,0:T(8,128)}', space=vmem, size = 0x1000, scoped, tag = 'scratch operand']
  %s0 = inlined_call_operand.hbm [shape: f32[10,8,128], index: 0, kind: input, shape index: {}]
  %s1 = inlined_call_operand.hbm [shape: f32[8,128], index: 1, kind: input, shape index: {}]
  %s2 = inlined_call_operand.vmem [shape: f32[1,128], index: 2, kind: input, shape index: {}]
  %s3 = inlined_call_operand.hbm [shape: f32[1,128], index: 3, kind: input, shape index: {}]
  %s4 = inlined_call_operand.hbm [shape: bf16[128,512], index: 4, kind: input, shape index: {}]
  %s5 = inlined_call_operand.hbm [shape: bf16[128,512], index: 5, kind: input, shape index: {}]
  %s6 = inlined_call_operand.vmem [shape: f32[1,512], index: 6, kind: input, shape index: {}]
  %s7 = inlined_call_operand.hbm [shape: f32[10,8,128], index: 7, kind: output, shape index: {0}]
  %s8 = inlined_call_operand.hbm [shape: f32[10,8,128], index: 8, kind: output, shape index: {1}]
  %9 = xla_tuple %s7, %s8
  %s10 = sld [smem:[#allocation0]]
  $region93: #{tpu_custom_call.1} parent=0
    _
  %s12 = ssub.s32 1, %s10
  %s13 = scalar_select 0, %s12, %s10
  $region1: #{tpu_custom_call.1} parent=0
    #allocation4 [shape = 'u8[8192]{0}', space=vmem, size = 0x2000, scoped, tag = 'input window, operand 0']
    #allocation5 [shape = 's32[2]{0}', space=sflag, size = 0x8, scoped, tag = 'scoped memory for tpu_custom_call.1']
    #allocation6 [shape = 's32[2]{0}', space=sflag, size = 0x8, scoped, tag = 'scoped memory for tpu_custom_call.1']
    #allocation7 [shape = 'u8[4096]{0}', space=vmem, size = 0x1000, scoped, tag = 'input window, operand 1, single buffered']
    #allocation8 [shape = 's32[1]{0}', space=sflag, size = 0x4, scoped, tag = 'scoped memory for tpu_custom_call.1']
    #allocation9 [shape = 'u8[512]{0}', space=vmem, size = 0x400, scoped, tag = 'input window, operand 3, single buffered']
    #allocation10 [shape = 'u8[131072]{0}', space=vmem, size = 0x20000, scoped, tag = 'input window, operand 4, single buffered']
    #allocation11 [shape = 's32[1]{0}', space=sflag, size = 0x4, scoped, tag = 'scoped memory for tpu_custom_call.1']
    #allocation12 [shape = 'u8[131072]{0}', space=vmem, size = 0x20000, scoped, tag = 'input window, operand 5, single buffered']
    #allocation13 [shape = 'u8[8192]{0}', space=vmem, size = 0x2000, scoped, tag = 'output window, operand 0']
    #allocation14 [shape = 'u8[8192]{0}', space=vmem, size = 0x2000, scoped, tag = 'output window, operand 1']
    #allocation15 [shape = 's32[2]{0}', space=sflag, size = 0x8, scoped, tag = 'scoped memory for tpu_custom_call.1']
    %14 = vsyncpa [#allocation5], 0
    %s15 = scalar_lea.sflag [#allocation5], 1
    %16 = vsyncpa %s15, 0
    %17 = vsyncpa [#allocation8], 0
    %18 = vsyncpa [#allocation11], 0
    %19 = vsyncpa [#allocation6], 0
    %s20 = scalar_lea.sflag [#allocation6], 1
    %21 = vsyncpa %s20, 0
    %22 = vsyncpa [#allocation15], 0
    %s23 = scalar_lea.sflag [#allocation15], 1
    %24 = vsyncpa %s23, 0
    loop: start=0, step=1, limit=12
    $region2: #{tpu_custom_call.1} parent=1 // loop_pre_header
      _
    $region3: #{tpu_custom_call.1} parent=1 // loop_header
      %s26 = sphi 0, %s30
      %p27 = scmp.ge.s32.totalorder %s26, 12
      %s33 = sphi 0, %s45
      %s34 = sphi 0, %s41
      %s35 = sphi 0, %s33
      %s36 = sphi 0, %s34
      %s37 = sphi 0, %s35
      %s38 = sphi 0, %s36
      %s50 = sphi 0, %s52
      %s53 = sphi 0, %s50
      %s54 = sphi 0, %s53
      %s70 = sphi 0, %s54
      %s76 = sphi 0, %s78
      %s79 = sphi 0, %s76
      %s80 = sphi 0, %s79
      %s96 = sphi 0, %s80
      %s100 = sphi 0, %s100
      %s102 = sphi 0, %s100
      %s103 = sphi 0, %s102
      %s117 = sphi 0, %s103
      %s121 = sphi 0, %s121
      %s123 = sphi 0, %s121
      %s124 = sphi 0, %s123
      %s138 = sphi 0, %s124
      %s142 = sphi 0, %s142
      %s144 = sphi 0, %s142
      %s145 = sphi 0, %s144
      %s159 = sphi 0, %s145
      %s163 = sphi 0, %s163
      %s165 = sphi 0, %s163
      %s166 = sphi 0, %s165
      %s180 = sphi 0, %s166
      %s184 = sphi 0, %s184
      %s186 = sphi 0, %s184
      %s187 = sphi 0, %s186
      %s201 = sphi 0, %s187
      %s209 = sphi 0, %s211
      %s212 = sphi 0, %s209
      %s213 = sphi 0, %s212
      %s229 = sphi 0, %s213
      %s237 = sphi 0, %s239
      %s240 = sphi 0, %s237
      %s241 = sphi 0, %s240
      %s257 = sphi 0, %s241
    $region4: #{tpu_custom_call.1} parent=1 // loop_header_branch
      %29 = sbr.rel (%p27) target = $region8
    $region5: #{tpu_custom_call.1} parent=1 // loop_body
      %s31 = ssub.s32 %s26, 1
      %s32 = ssub.s32 %s26, 2
      %s39 = sadd.s32 1, %s34
      %p40 = scmp.ge.s32.totalorder %s39, 10
      %s41 = scalar_select %p40, 0, %s39
      %s42 = sadd.s32 1, %s33
      %s43 = scalar_select %p40, %s42, %s33
      %p44 = scmp.ge.s32.totalorder %s43, 1
      %s45 = scalar_select %p44, 0, %s43
      %s46 = ssub.s32 %s34, %s41
      %s47 = ssub.s32 %s33, %s45
      %s48 = sor.u32 %s46, %s47
      %p49 = scmp.eq.s32.totalorder %s48, 0
      %s51 = sadd.s32 %s50, 1
      %s52 = scalar_select %p49, %s50, %s51
      %p55 = pneg %p49
      %p56 = scmp.eq.s32.totalorder %s26, 9
      %p57 = por %p55, %p56
      %p58 = scmp.ne.s32.totalorder %s50, %s53
      %p59 = scmp.eq.s32.totalorder %s26, 0
      %p60 = por %p58, %p59
      %p61 = scmp.ne.s32.totalorder %s50, %s53
      %p62 = scmp.eq.s32.totalorder %s31, 9
      %p63 = por %p61, %p62
      %p64 = scmp.ne.s32.totalorder %s53, %s54
      %p65 = scmp.eq.s32.totalorder %s31, 0
      %p66 = por %p64, %p65
      %p67 = scmp.ne.s32.totalorder %s53, %s54
      %p68 = scmp.eq.s32.totalorder %s32, 9
      %p69 = por %p67, %p68
      %p71 = scmp.ne.s32.totalorder %s54, %s70
      %p72 = scmp.eq.s32.totalorder %s32, 0
      %p73 = por %p71, %p72
      %s74 = ssub.s32 %s33, %s45
      %p75 = scmp.eq.s32.totalorder %s74, 0
      %s77 = sadd.s32 %s76, 1
      %s78 = scalar_select %p75, %s76, %s77
      %p81 = pneg %p75
      %p82 = scmp.eq.s32.totalorder %s26, 9
      %p83 = por %p81, %p82
      %p84 = scmp.ne.s32.totalorder %s76, %s79
      %p85 = scmp.eq.s32.totalorder %s26, 0
      %p86 = por %p84, %p85
      %p87 = scmp.ne.s32.totalorder %s76, %s79
      %p88 = scmp.eq.s32.totalorder %s31, 9
      %p89 = por %p87, %p88
      %p90 = scmp.ne.s32.totalorder %s79, %s80
      %p91 = scmp.eq.s32.totalorder %s31, 0
      %p92 = por %p90, %p91
      %p93 = scmp.ne.s32.totalorder %s79, %s80
      %p94 = scmp.eq.s32.totalorder %s32, 9
      %p95 = por %p93, %p94
      %p97 = scmp.ne.s32.totalorder %s80, %s96
      %p98 = scmp.eq.s32.totalorder %s32, 0
      %p99 = por %p97, %p98
      %s101 = sadd.s32 %s100, 1
      %p104 = scmp.eq.s32.totalorder %s26, 9
      %p105 = scmp.ne.s32.totalorder %s100, %s102
      %p106 = scmp.eq.s32.totalorder %s26, 0
      %p107 = por %p105, %p106
      %p108 = scmp.ne.s32.totalorder %s100, %s102
      %p109 = scmp.eq.s32.totalorder %s31, 9
      %p110 = por %p108, %p109
      %p111 = scmp.ne.s32.totalorder %s102, %s103
      %p112 = scmp.eq.s32.totalorder %s31, 0
      %p113 = por %p111, %p112
      %p114 = scmp.ne.s32.totalorder %s102, %s103
      %p115 = scmp.eq.s32.totalorder %s32, 9
      %p116 = por %p114, %p115
      %p118 = scmp.ne.s32.totalorder %s103, %s117
      %p119 = scmp.eq.s32.totalorder %s32, 0
      %p120 = por %p118, %p119
      %s122 = sadd.s32 %s121, 1
      %p125 = scmp.eq.s32.totalorder %s26, 9
      %p126 = scmp.ne.s32.totalorder %s121, %s123
      %p127 = scmp.eq.s32.totalorder %s26, 0
      %p128 = por %p126, %p127
      %p129 = scmp.ne.s32.totalorder %s121, %s123
      %p130 = scmp.eq.s32.totalorder %s31, 9
      %p131 = por %p129, %p130
      %p132 = scmp.ne.s32.totalorder %s123, %s124
      %p133 = scmp.eq.s32.totalorder %s31, 0
      %p134 = por %p132, %p133
      %p135 = scmp.ne.s32.totalorder %s123, %s124
      %p136 = scmp.eq.s32.totalorder %s32, 9
      %p137 = por %p135, %p136
      %p139 = scmp.ne.s32.totalorder %s124, %s138
      %p140 = scmp.eq.s32.totalorder %s32, 0
      %p141 = por %p139, %p140
      %s143 = sadd.s32 %s142, 1
      %p146 = scmp.eq.s32.totalorder %s26, 9
      %p147 = scmp.ne.s32.totalorder %s142, %s144
      %p148 = scmp.eq.s32.totalorder %s26, 0
      %p149 = por %p147, %p148
      %p150 = scmp.ne.s32.totalorder %s142, %s144
      %p151 = scmp.eq.s32.totalorder %s31, 9
      %p152 = por %p150, %p151
      %p153 = scmp.ne.s32.totalorder %s144, %s145
      %p154 = scmp.eq.s32.totalorder %s31, 0
      %p155 = por %p153, %p154
      %p156 = scmp.ne.s32.totalorder %s144, %s145
      %p157 = scmp.eq.s32.totalorder %s32, 9
      %p158 = por %p156, %p157
      %p160 = scmp.ne.s32.totalorder %s145, %s159
      %p161 = scmp.eq.s32.totalorder %s32, 0
      %p162 = por %p160, %p161
      %s164 = sadd.s32 %s163, 1
      %p167 = scmp.eq.s32.totalorder %s26, 9
      %p168 = scmp.ne.s32.totalorder %s163, %s165
      %p169 = scmp.eq.s32.totalorder %s26, 0
      %p170 = por %p168, %p169
      %p171 = scmp.ne.s32.totalorder %s163, %s165
      %p172 = scmp.eq.s32.totalorder %s31, 9
      %p173 = por %p171, %p172
      %p174 = scmp.ne.s32.totalorder %s165, %s166
      %p175 = scmp.eq.s32.totalorder %s31, 0
      %p176 = por %p174, %p175
      %p177 = scmp.ne.s32.totalorder %s165, %s166
      %p178 = scmp.eq.s32.totalorder %s32, 9
      %p179 = por %p177, %p178
      %p181 = scmp.ne.s32.totalorder %s166, %s180
      %p182 = scmp.eq.s32.totalorder %s32, 0
      %p183 = por %p181, %p182
      %s185 = sadd.s32 %s184, 1
      %p188 = scmp.eq.s32.totalorder %s26, 9
      %p189 = scmp.ne.s32.totalorder %s184, %s186
      %p190 = scmp.eq.s32.totalorder %s26, 0
      %p191 = por %p189, %p190
      %p192 = scmp.ne.s32.totalorder %s184, %s186
      %p193 = scmp.eq.s32.totalorder %s31, 9
      %p194 = por %p192, %p193
      %p195 = scmp.ne.s32.totalorder %s186, %s187
      %p196 = scmp.eq.s32.totalorder %s31, 0
      %p197 = por %p195, %p196
      %p198 = scmp.ne.s32.totalorder %s186, %s187
      %p199 = scmp.eq.s32.totalorder %s32, 9
      %p200 = por %p198, %p199
      %p202 = scmp.ne.s32.totalorder %s187, %s201
      %p203 = scmp.eq.s32.totalorder %s32, 0
      %p204 = por %p202, %p203
      %s205 = ssub.s32 %s34, %s41
      %s206 = ssub.s32 %s33, %s45
      %s207 = sor.u32 %s205, %s206
      %p208 = scmp.eq.s32.totalorder %s207, 0
      %s210 = sadd.s32 %s209, 1
      %s211 = scalar_select %p208, %s209, %s210
      %p214 = pneg %p208
      %p215 = scmp.eq.s32.totalorder %s26, 9
      %p216 = por %p214, %p215
      %p217 = scmp.ne.s32.totalorder %s209, %s212
      %p218 = scmp.eq.s32.totalorder %s26, 0
      %p219 = por %p217, %p218
      %p220 = scmp.ne.s32.totalorder %s209, %s212
      %p221 = scmp.eq.s32.totalorder %s31, 9
      %p222 = por %p220, %p221
      %p223 = scmp.ne.s32.totalorder %s212, %s213
      %p224 = scmp.eq.s32.totalorder %s31, 0
      %p225 = por %p223, %p224
      %p226 = scmp.ne.s32.totalorder %s212, %s213
      %p227 = scmp.eq.s32.totalorder %s32, 9
      %p228 = por %p226, %p227
      %p230 = scmp.ne.s32.totalorder %s213, %s229
      %p231 = scmp.eq.s32.totalorder %s32, 0
      %p232 = por %p230, %p231
      %s233 = ssub.s32 %s34, %s41
      %s234 = ssub.s32 %s33, %s45
      %s235 = sor.u32 %s233, %s234
      %p236 = scmp.eq.s32.totalorder %s235, 0
      %s238 = sadd.s32 %s237, 1
      %s239 = scalar_select %p236, %s237, %s238
      %p242 = pneg %p236
      %p243 = scmp.eq.s32.totalorder %s26, 9
      %p244 = por %p242, %p243
      %p245 = scmp.ne.s32.totalorder %s237, %s240
      %p246 = scmp.eq.s32.totalorder %s26, 0
      %p247 = por %p245, %p246
      %p248 = scmp.ne.s32.totalorder %s237, %s240
      %p249 = scmp.eq.s32.totalorder %s31, 9
      %p250 = por %p248, %p249
      %p251 = scmp.ne.s32.totalorder %s240, %s241
      %p252 = scmp.eq.s32.totalorder %s31, 0
      %p253 = por %p251, %p252
      %p254 = scmp.ne.s32.totalorder %s240, %s241
      %p255 = scmp.eq.s32.totalorder %s32, 9
      %p256 = por %p254, %p255
      %p258 = scmp.ne.s32.totalorder %s241, %s257
      %p259 = scmp.eq.s32.totalorder %s32, 0
      %p260 = por %p258, %p259
      %p261 = scmp.le.s32.totalorder 1, %s26
      %p262 = scmp.lt.s32.totalorder %s26, 11
      %p263 = pnand %p261, %p262
      %p264 = pneg %p263
      // Predicated region
      $region9: #{tpu_custom_call.1} parent=5 // pred_check
        _
      $region10: #{tpu_custom_call.1} parent=5 // pred_check_branch
        %266 = sbr.rel (%p263) target = $region12
      $region11: #{tpu_custom_call.1} parent=5 // pred_region
        %s267 = ssub.s32 %s26, 1
        // Predicated region
        $region13: #{tpu_custom_call.1} parent=11 // pred_check
          %p268 = pneg %p92
        $region14: #{tpu_custom_call.1} parent=11 // pred_check_branch
          %270 = sbr.rel (%p268) target = $region16
        $region15: #{tpu_custom_call.1} parent=11 // pred_region
          %272 = vsyncadd [#allocation8], 0
          %s273 = smul.addr %s35, 8
          %s274 = scalar_lea.hbm %s1, %s273
          %s276 = sshll.u32 %s274, 4
          %s277 = int_to_ptr.hbm [resolvable:$true] %s276
          %s278 = sshll.u32 [#allocation7], 4
          %s279 = int_to_ptr.vmem [resolvable:$true] %s278
          %281 = dma.hbm_to_vmem [thread:$0]  %s277, 128, %s279, [#allocation8]
        $region16: #{tpu_custom_call.1} parent=11 // pred_fallthru
          _
        // Predicated region
        $region17: #{tpu_custom_call.1} parent=11 // pred_check
          %p282 = pneg %p113
        $region18: #{tpu_custom_call.1} parent=11 // pred_check_branch
          %284 = sbr.rel (%p282) target = $region20
        $region19: #{tpu_custom_call.1} parent=11 // pred_region
          _
        $region20: #{tpu_custom_call.1} parent=11 // pred_fallthru
          _
        // Predicated region
        $region21: #{tpu_custom_call.1} parent=11 // pred_check
          %p285 = pneg %p134
        $region22: #{tpu_custom_call.1} parent=11 // pred_check_branch
          %287 = sbr.rel (%p285) target = $region24
        $region23: #{tpu_custom_call.1} parent=11 // pred_region
          %289 = vsyncadd [#allocation8], 0
          %s291 = sshll.u32 %s3, 4
          %s292 = int_to_ptr.hbm [resolvable:$true] %s291
          %s293 = sshll.u32 [#allocation9], 4
          %s294 = int_to_ptr.vmem [resolvable:$true] %s293
          %296 = dma.hbm_to_vmem [thread:$0]  %s292, 16, %s294, [#allocation8]
        $region24: #{tpu_custom_call.1} parent=11 // pred_fallthru
          _
        // Predicated region
        $region25: #{tpu_custom_call.1} parent=11 // pred_check
          %p297 = pneg %p155
        $region26: #{tpu_custom_call.1} parent=11 // pred_check_branch
          %299 = sbr.rel (%p297) target = $region28
        $region27: #{tpu_custom_call.1} parent=11 // pred_region
          %301 = vsyncadd [#allocation11], 0
          %s302 = sshll.u32 %s4, 4
          %s303 = int_to_ptr.hbm [resolvable:$true] %s302
          %s304 = sshll.u32 [#allocation10], 4
          %s305 = int_to_ptr.vmem [resolvable:$true] %s304
          %310 = dma.hbm_to_vmem [thread:$0]  %s303, 4096, %s305, [#allocation11], 256, 256, 16
        $region28: #{tpu_custom_call.1} parent=11 // pred_fallthru
          _
        // Predicated region
        $region29: #{tpu_custom_call.1} parent=11 // pred_check
          %p311 = pneg %p176
        $region30: #{tpu_custom_call.1} parent=11 // pred_check_branch
          %313 = sbr.rel (%p311) target = $region32
        $region31: #{tpu_custom_call.1} parent=11 // pred_region
          %315 = vsyncadd [#allocation11], 0
          %s316 = sshll.u32 %s5, 4
          %s317 = int_to_ptr.hbm [resolvable:$true] %s316
          %s318 = sshll.u32 [#allocation12], 4
          %s319 = int_to_ptr.vmem [resolvable:$true] %s318
          %324 = dma.hbm_to_vmem [thread:$0]  %s317, 4096, %s319, [#allocation11], 256, 256, 16
        $region32: #{tpu_custom_call.1} parent=11 // pred_fallthru
          _
        // Predicated region
        $region33: #{tpu_custom_call.1} parent=11 // pred_check
          %p325 = pneg %p197
        $region34: #{tpu_custom_call.1} parent=11 // pred_check_branch
          %327 = sbr.rel (%p325) target = $region36
        $region35: #{tpu_custom_call.1} parent=11 // pred_region
          _
        $region36: #{tpu_custom_call.1} parent=11 // pred_fallthru
          _
      $region12: #{tpu_custom_call.1} parent=5 // pred_fallthru
        _
      %p328 = scmp.lt.s32.totalorder %s26, 10
      // Predicated region
      $region37: #{tpu_custom_call.1} parent=5 // pred_check
        %p329 = pneg %p328
      $region38: #{tpu_custom_call.1} parent=5 // pred_check_branch
        %331 = sbr.rel (%p329) target = $region40
      $region39: #{tpu_custom_call.1} parent=5 // pred_region
        // Predicated region
        $region41: #{tpu_custom_call.1} parent=39 // pred_check
          %p332 = pneg %p60
        $region42: #{tpu_custom_call.1} parent=39 // pred_check_branch
          %334 = sbr.rel (%p332) target = $region44
        $region43: #{tpu_custom_call.1} parent=39 // pred_region
          %s335 = sand.u32 %s50, 1
          %s336 = scalar_lea.sflag [#allocation5], %s335
          %s337 = sand.u32 %s50, 1
          %s338 = smul.addr %s337, 8
          %s339 = scalar_lea.vmem [#allocation4], %s338
          %341 = vsyncadd %s336, 0
          %s342 = sadd.s32 %s33, %s34
          %s343 = smul.addr %s342, 8
          %s344 = scalar_lea.hbm %s0, %s343
          %s346 = sshll.u32 %s344, 4
          %s347 = int_to_ptr.hbm [resolvable:$true] %s346
          %s348 = sshll.u32 %s339, 4
          %s349 = int_to_ptr.vmem [resolvable:$true] %s348
          %351 = dma.hbm_to_vmem [thread:$0]  %s347, 128, %s349, %s336
        $region44: #{tpu_custom_call.1} parent=39 // pred_fallthru
          _
      $region40: #{tpu_custom_call.1} parent=5 // pred_fallthru
        _
      %p352 = scmp.le.s32.totalorder 1, %s26
      %p353 = scmp.lt.s32.totalorder %s26, 11
      %p354 = pnand %p352, %p353
      %p355 = pneg %p354
      // Predicated region
      $region45: #{tpu_custom_call.1} parent=5 // pred_check
        _
      $region46: #{tpu_custom_call.1} parent=5 // pred_check_branch
        %357 = sbr.rel (%p354) target = $region48
      $region47: #{tpu_custom_call.1} parent=5 // pred_region
        %s358 = ssub.s32 %s26, 1
        %s359 = sand.u32 %s53, 1
        %s360 = scalar_lea.sflag [#allocation5], %s359
        %s361 = sand.u32 %s53, 1
        %s362 = smul.addr %s361, 8
        %s363 = scalar_lea.vmem [#allocation4], %s362
        // Predicated region
        $region49: #{tpu_custom_call.1} parent=47 // pred_check
          %p364 = pneg %p66
        $region50: #{tpu_custom_call.1} parent=47 // pred_check_branch
          %366 = sbr.rel (%p364) target = $region52
        $region51: #{tpu_custom_call.1} parent=47 // pred_region
          %368 = dma.done %s360, 128
        $region52: #{tpu_custom_call.1} parent=47 // pred_fallthru
          _
        // Predicated region
        $region53: #{tpu_custom_call.1} parent=47 // pred_check
          %p369 = pneg %p92
        $region54: #{tpu_custom_call.1} parent=47 // pred_check_branch
          %371 = sbr.rel (%p369) target = $region56
        $region55: #{tpu_custom_call.1} parent=47 // pred_region
          %373 = dma.done [#allocation8], 128
        $region56: #{tpu_custom_call.1} parent=47 // pred_fallthru
          _
        // Predicated region
        $region57: #{tpu_custom_call.1} parent=47 // pred_check
          %p374 = pneg %p134
        $region58: #{tpu_custom_call.1} parent=47 // pred_check_branch
          %376 = sbr.rel (%p374) target = $region60
        $region59: #{tpu_custom_call.1} parent=47 // pred_region
          %378 = dma.done [#allocation8], 16
        $region60: #{tpu_custom_call.1} parent=47 // pred_fallthru
          _
        // Predicated region
        $region61: #{tpu_custom_call.1} parent=47 // pred_check
          %p379 = pneg %p155
        $region62: #{tpu_custom_call.1} parent=47 // pred_check_branch
          %381 = sbr.rel (%p379) target = $region64
        $region63: #{tpu_custom_call.1} parent=47 // pred_region
          %383 = dma.done [#allocation11], 4096
        $region64: #{tpu_custom_call.1} parent=47 // pred_fallthru
          _
        // Predicated region
        $region65: #{tpu_custom_call.1} parent=47 // pred_check
          %p384 = pneg %p176
        $region66: #{tpu_custom_call.1} parent=47 // pred_check_branch
          %386 = sbr.rel (%p384) target = $region68
        $region67: #{tpu_custom_call.1} parent=47 // pred_region
          %388 = dma.done [#allocation11], 4096
        $region68: #{tpu_custom_call.1} parent=47 // pred_fallthru
          _
        %s389 = sand.u32 %s53, 1
        %s390 = scalar_lea.sflag [#allocation5], %s389
        %s391 = sand.u32 %s53, 1
        %s392 = smul.addr %s391, 8
        %s393 = scalar_lea.vmem [#allocation4], %s392
        %p394 = pneg %p66
        %p395 = pneg %p63
        %p396 = pneg %p92
        %p397 = pneg %p89
        %p398 = pneg %p113
        %p399 = pneg %p110
        %p400 = pneg %p134
        %p401 = pneg %p131
        %p402 = pneg %p155
        %p403 = pneg %p152
        %p404 = pneg %p176
        %p405 = pneg %p173
        %p406 = pneg %p197
        %p407 = pneg %p194
        %p408 = pneg %p225
        %p409 = pneg %p222
        %s410 = sand.u32 %s212, 1
        %s411 = scalar_lea.sflag [#allocation6], %s410
        %s412 = sand.u32 %s212, 1
        %s413 = smul.addr %s412, 8
        %s414 = scalar_lea.vmem [#allocation13], %s413
        %p415 = pneg %p253
        %p416 = pneg %p250
        %s417 = sand.u32 %s240, 1
        %s418 = scalar_lea.sflag [#allocation15], %s417
        %s419 = sand.u32 %s240, 1
        %s420 = smul.addr %s419, 8
        %s421 = scalar_lea.vmem [#allocation14], %s420
        %p422 = scmp.eq.s32.totalorder %s36, 0
        // Predicated region
        $region69: #{tpu_custom_call.1} parent=47 // pred_check
          %p423 = pneg %p422
        $region70: #{tpu_custom_call.1} parent=47 // pred_check_branch
          %425 = sbr.rel (%p423) target = $region72
        $region71: #{tpu_custom_call.1} parent=47 // pred_region
          %426 = vst [vmem:[#allocation2] sm:$0xff] 0.0
          %427 = vst [vmem:[#allocation3] sm:$0xff] 0.0
        $region72: #{tpu_custom_call.1} parent=47 // pred_fallthru
          _
        %v428 = vld [vmem:[%s363] sm:$0xff]
        %v429 = vld [vmem:[#allocation2] sm:$0xff]
        %v430 = vld [vmem:[#allocation3] sm:$0xff]
        %v431 = vld [vmem:[%s2] sm:$0x1]
        %v433 = vperm.slane %v431, 0
        %v435 = vmul.f32 %v429, %v433
        %v436 = vld [vmem:[#allocation9] sm:$0x1]
        %v438 = vperm.slane %v436, 0
        %v440 = vmul.f32 %v430, %v438
        %v441 = vadd.f32 %v435, %v440
        %442 = vadd.xlane.f32.xlu0 %v441
        %v443 = vpop.xlane.xlu0 %442
        %v444 = vld [vmem:[#allocation7] sm:$0xff]
        %v445 = vadd.f32 %v444, %v443
        %446 = vmax.xlane.f32.xlu0 %v445
        %v447 = vpop.xlane.xlu0 %446
        %v448 = vsub.f32 %v445, %v447
        %v449 = vmul.f32 %v448, 1.442695
        %v450 = vpow.pop %v449
        %451 = vadd.xlane.f32.xlu0 %v450
        %v452 = vpop.xlane.xlu0 %451
        %v453 = vrcp.pop %v452
        %v454 = vmul.f32 %v450, %v453
        %v455 = vmul.f32 %v454, %v428
        %v456 = vpack.c.bf16 %v455, %v455
        %v457 = vld [vmem:[#allocation10] sm:$0xff]
        %v458 = vld [vmem:[#allocation10 + $0x8] sm:$0xff]
        %v459 = vld [vmem:[#allocation10 + $0x10] sm:$0xff]
        %v460 = vld [vmem:[#allocation10 + $0x18] sm:$0xff]
        %v461 = vld [vmem:[#allocation10 + $0x20] sm:$0xff]
        %v462 = vld [vmem:[#allocation10 + $0x28] sm:$0xff]
        %v463 = vld [vmem:[#allocation10 + $0x30] sm:$0xff]
        %v464 = vld [vmem:[#allocation10 + $0x38] sm:$0xff]
        %v465 = vld [vmem:[#allocation10 + $0x40] sm:$0xff]
        %v466 = vld [vmem:[#allocation10 + $0x48] sm:$0xff]
        %v467 = vld [vmem:[#allocation10 + $0x50] sm:$0xff]
        %v468 = vld [vmem:[#allocation10 + $0x58] sm:$0xff]
        %v469 = vld [vmem:[#allocation10 + $0x60] sm:$0xff]
        %v470 = vld [vmem:[#allocation10 + $0x68] sm:$0xff]
        %v471 = vld [vmem:[#allocation10 + $0x70] sm:$0xff]
        %v472 = vld [vmem:[#allocation10 + $0x78] sm:$0xff]
        %v473 = vld [vmem:[#allocation10 + $0x80] sm:$0xff]
        %v474 = vld [vmem:[#allocation10 + $0x88] sm:$0xff]
        %v475 = vld [vmem:[#allocation10 + $0x90] sm:$0xff]
        %v476 = vld [vmem:[#allocation10 + $0x98] sm:$0xff]
        %v477 = vld [vmem:[#allocation10 + $0xa0] sm:$0xff]
        %v478 = vld [vmem:[#allocation10 + $0xa8] sm:$0xff]
        %v479 = vld [vmem:[#allocation10 + $0xb0] sm:$0xff]
        %v480 = vld [vmem:[#allocation10 + $0xb8] sm:$0xff]
        %v481 = vld [vmem:[#allocation10 + $0xc0] sm:$0xff]
        %v482 = vld [vmem:[#allocation10 + $0xc8] sm:$0xff]
        %v483 = vld [vmem:[#allocation10 + $0xd0] sm:$0xff]
        %v484 = vld [vmem:[#allocation10 + $0xd8] sm:$0xff]
        %v485 = vld [vmem:[#allocation10 + $0xe0] sm:$0xff]
        %v486 = vld [vmem:[#allocation10 + $0xe8] sm:$0xff]
        %v487 = vld [vmem:[#allocation10 + $0xf0] sm:$0xff]
        %v488 = vld [vmem:[#allocation10 + $0xf8] sm:$0xff]
        %v489 = vpack.c.bf16 %v429, %v429
        %v490 = vld [vmem:[#allocation12] sm:$0xff]
        %v491 = vld [vmem:[#allocation12 + $0x8] sm:$0xff]
        %v492 = vld [vmem:[#allocation12 + $0x10] sm:$0xff]
        %v493 = vld [vmem:[#allocation12 + $0x18] sm:$0xff]
        %v494 = vld [vmem:[#allocation12 + $0x20] sm:$0xff]
        %v495 = vld [vmem:[#allocation12 + $0x28] sm:$0xff]
        %v496 = vld [vmem:[#allocation12 + $0x30] sm:$0xff]
        %v497 = vld [vmem:[#allocation12 + $0x38] sm:$0xff]
        %v498 = vld [vmem:[#allocation12 + $0x40] sm:$0xff]
        %v499 = vld [vmem:[#allocation12 + $0x48] sm:$0xff]
        %v500 = vld [vmem:[#allocation12 + $0x50] sm:$0xff]
        %v501 = vld [vmem:[#allocation12 + $0x58] sm:$0xff]
        %v502 = vld [vmem:[#allocation12 + $0x60] sm:$0xff]
        %v503 = vld [vmem:[#allocation12 + $0x68] sm:$0xff]
        %v504 = vld [vmem:[#allocation12 + $0x70] sm:$0xff]
        %v505 = vld [vmem:[#allocation12 + $0x78] sm:$0xff]
        %v506 = vld [vmem:[#allocation12 + $0x80] sm:$0xff]
        %v507 = vld [vmem:[#allocation12 + $0x88] sm:$0xff]
        %v508 = vld [vmem:[#allocation12 + $0x90] sm:$0xff]
        %v509 = vld [vmem:[#allocation12 + $0x98] sm:$0xff]
        %v510 = vld [vmem:[#allocation12 + $0xa0] sm:$0xff]
        %v511 = vld [vmem:[#allocation12 + $0xa8] sm:$0xff]
        %v512 = vld [vmem:[#allocation12 + $0xb0] sm:$0xff]
        %v513 = vld [vmem:[#allocation12 + $0xb8] sm:$0xff]
        %v514 = vld [vmem:[#allocation12 + $0xc0] sm:$0xff]
        %v515 = vld [vmem:[#allocation12 + $0xc8] sm:$0xff]
        %v516 = vld [vmem:[#allocation12 + $0xd0] sm:$0xff]
        %v517 = vld [vmem:[#allocation12 + $0xd8] sm:$0xff]
        %v518 = vld [vmem:[#allocation12 + $0xe0] sm:$0xff]
        %v519 = vld [vmem:[#allocation12 + $0xe8] sm:$0xff]
        %v520 = vld [vmem:[#allocation12 + $0xf0] sm:$0xff]
        %v521 = vld [vmem:[#allocation12 + $0xf8] sm:$0xff]
        %v554 = vunpack.c.l.b16 %v490
        %v555 = vunpack.c.h.b16 %v490
        %v556 = vunpack.c.l.b16 %v491
        %v557 = vunpack.c.h.b16 %v491
        %v558 = vunpack.c.l.b16 %v492
        %v559 = vunpack.c.h.b16 %v492
        %v560 = vunpack.c.l.b16 %v493
        %v561 = vunpack.c.h.b16 %v493
        %v562 = vunpack.c.l.b16 %v494
        %v563 = vunpack.c.h.b16 %v494
        %v564 = vunpack.c.l.b16 %v495
        %v565 = vunpack.c.h.b16 %v495
        %v566 = vunpack.c.l.b16 %v496
        %v567 = vunpack.c.h.b16 %v496
        %v568 = vunpack.c.l.b16 %v497
        %v569 = vunpack.c.h.b16 %v497
        %v570 = vunpack.c.l.b16 %v498
        %v571 = vunpack.c.h.b16 %v498
        %v572 = vunpack.c.l.b16 %v499
        %v573 = vunpack.c.h.b16 %v499
        %v574 = vunpack.c.l.b16 %v500
        %v575 = vunpack.c.h.b16 %v500
        %v576 = vunpack.c.l.b16 %v501
        %v577 = vunpack.c.h.b16 %v501
        %v578 = vunpack.c.l.b16 %v502
        %v579 = vunpack.c.h.b16 %v502
        %v580 = vunpack.c.l.b16 %v503
        %v581 = vunpack.c.h.b16 %v503
        %v582 = vunpack.c.l.b16 %v504
        %v583 = vunpack.c.h.b16 %v504
        %v584 = vunpack.c.l.b16 %v505
        %v585 = vunpack.c.h.b16 %v505
        %v586 = vunpack.c.l.b16 %v506
        %v587 = vunpack.c.h.b16 %v506
        %v588 = vunpack.c.l.b16 %v507
        %v589 = vunpack.c.h.b16 %v507
        %v590 = vunpack.c.l.b16 %v508
        %v591 = vunpack.c.h.b16 %v508
        %v592 = vunpack.c.l.b16 %v509
        %v593 = vunpack.c.h.b16 %v509
        %v594 = vunpack.c.l.b16 %v510
        %v595 = vunpack.c.h.b16 %v510
        %v596 = vunpack.c.l.b16 %v511
        %v597 = vunpack.c.h.b16 %v511
        %v598 = vunpack.c.l.b16 %v512
        %v599 = vunpack.c.h.b16 %v512
        %v600 = vunpack.c.l.b16 %v513
        %v601 = vunpack.c.h.b16 %v513
        %v602 = vunpack.c.l.b16 %v514
        %v603 = vunpack.c.h.b16 %v514
        %v604 = vunpack.c.l.b16 %v515
        %v605 = vunpack.c.h.b16 %v515
        %v606 = vunpack.c.l.b16 %v516
        %v607 = vunpack.c.h.b16 %v516
        %v608 = vunpack.c.l.b16 %v517
        %v609 = vunpack.c.h.b16 %v517
        %v610 = vunpack.c.l.b16 %v518
        %v611 = vunpack.c.h.b16 %v518
        %v612 = vunpack.c.l.b16 %v519
        %v613 = vunpack.c.h.b16 %v519
        %v614 = vunpack.c.l.b16 %v520
        %v615 = vunpack.c.h.b16 %v520
        %v616 = vunpack.c.l.b16 %v521
        %v617 = vunpack.c.h.b16 %v521
        %v618 = vpack.c.b16 %v558, %v554
        %v619 = vpack.c.b16 %v559, %v555
        %v620 = vpack.c.b16 %v560, %v556
        %v621 = vpack.c.b16 %v561, %v557
        %v622 = vpack.c.b16 %v566, %v562
        %v623 = vpack.c.b16 %v567, %v563
        %v624 = vpack.c.b16 %v568, %v564
        %v625 = vpack.c.b16 %v569, %v565
        %v626 = vpack.c.b16 %v574, %v570
        %v627 = vpack.c.b16 %v575, %v571
        %v628 = vpack.c.b16 %v576, %v572
        %v629 = vpack.c.b16 %v577, %v573
        %v630 = vpack.c.b16 %v582, %v578
        %v631 = vpack.c.b16 %v583, %v579
        %v632 = vpack.c.b16 %v584, %v580
        %v633 = vpack.c.b16 %v585, %v581
        %v634 = vpack.c.b16 %v590, %v586
        %v635 = vpack.c.b16 %v591, %v587
        %v636 = vpack.c.b16 %v592, %v588
        %v637 = vpack.c.b16 %v593, %v589
        %v638 = vpack.c.b16 %v598, %v594
        %v639 = vpack.c.b16 %v599, %v595
        %v640 = vpack.c.b16 %v600, %v596
        %v641 = vpack.c.b16 %v601, %v597
        %v642 = vpack.c.b16 %v606, %v602
        %v643 = vpack.c.b16 %v607, %v603
        %v644 = vpack.c.b16 %v608, %v604
        %v645 = vpack.c.b16 %v609, %v605
        %v646 = vpack.c.b16 %v614, %v610
        %v647 = vpack.c.b16 %v615, %v611
        %v648 = vpack.c.b16 %v616, %v612
        %v649 = vpack.c.b16 %v617, %v613
        %682 = vmatpush.bf16.msra.mxu0 %v646
        %683 = vmatpush.bf16.msra.mxu0 %v642
        %684 = vmatpush.bf16.msra.mxu0 %v638
        %685 = vmatpush.bf16.msra.mxu0 %v634
        %686 = vmatpush.bf16.msra.mxu0 %v630
        %687 = vmatpush.bf16.msra.mxu0 %v626
        %688 = vmatpush.bf16.msra.mxu0 %v622
        %689 = vmatpush.bf16.msra.mxu0 %v618
        %690 = vmatmul.bf16.gmra.mxu0 %v489
        %v691 = vpop.f32.mrf.mxu0
        %v692 = vadd.f32 0.0, %v691
        %v693 = vpop.f32.mrf.mxu0
        %694 = vdwg.mxu0
        %695 = vmatpush.bf16.msra.mxu0 %v647
        %696 = vmatpush.bf16.msra.mxu0 %v643
        %697 = vmatpush.bf16.msra.mxu0 %v639
        %698 = vmatpush.bf16.msra.mxu0 %v635
        %699 = vmatpush.bf16.msra.mxu0 %v631
        %700 = vmatpush.bf16.msra.mxu0 %v627
        %701 = vmatpush.bf16.msra.mxu0 %v623
        %702 = vmatpush.bf16.msra.mxu0 %v619
        %703 = vmatmul.bf16.gmra.mxu0 %v489
        %v704 = vpop.f32.mrf.mxu0
        %v705 = vadd.f32 0.0, %v704
        %v706 = vpop.f32.mrf.mxu0
        %707 = vdwg.mxu0
        %708 = vmatpush.bf16.msra.mxu0 %v648
        %709 = vmatpush.bf16.msra.mxu0 %v644
        %710 = vmatpush.bf16.msra.mxu0 %v640
        %711 = vmatpush.bf16.msra.mxu0 %v636
        %712 = vmatpush.bf16.msra.mxu0 %v632
        %713 = vmatpush.bf16.msra.mxu0 %v628
        %714 = vmatpush.bf16.msra.mxu0 %v624
        %715 = vmatpush.bf16.msra.mxu0 %v620
        %716 = vmatmul.bf16.gmra.mxu0 %v489
        %v717 = vpop.f32.mrf.mxu0
        %v718 = vadd.f32 0.0, %v717
        %v719 = vpop.f32.mrf.mxu0
        %720 = vdwg.mxu0
        %721 = vmatpush.bf16.msra.mxu0 %v649
        %722 = vmatpush.bf16.msra.mxu0 %v645
        %723 = vmatpush.bf16.msra.mxu0 %v641
        %724 = vmatpush.bf16.msra.mxu0 %v637
        %725 = vmatpush.bf16.msra.mxu0 %v633
        %726 = vmatpush.bf16.msra.mxu0 %v629
        %727 = vmatpush.bf16.msra.mxu0 %v625
        %728 = vmatpush.bf16.msra.mxu0 %v621
        %729 = vmatmul.bf16.gmra.mxu0 %v489
        %v730 = vpop.f32.mrf.mxu0
        %v731 = vadd.f32 0.0, %v730
        %v732 = vpop.f32.mrf.mxu0
        %733 = vdwg.mxu0
        %v766 = vunpack.c.l.b16 %v457
        %v767 = vunpack.c.h.b16 %v457
        %v768 = vunpack.c.l.b16 %v458
        %v769 = vunpack.c.h.b16 %v458
        %v770 = vunpack.c.l.b16 %v459
        %v771 = vunpack.c.h.b16 %v459
        %v772 = vunpack.c.l.b16 %v460
        %v773 = vunpack.c.h.b16 %v460
        %v774 = vunpack.c.l.b16 %v461
        %v775 = vunpack.c.h.b16 %v461
        %v776 = vunpack.c.l.b16 %v462
        %v777 = vunpack.c.h.b16 %v462
        %v778 = vunpack.c.l.b16 %v463
        %v779 = vunpack.c.h.b16 %v463
        %v780 = vunpack.c.l.b16 %v464
        %v781 = vunpack.c.h.b16 %v464
        %v782 = vunpack.c.l.b16 %v465
        %v783 = vunpack.c.h.b16 %v465
        %v784 = vunpack.c.l.b16 %v466
        %v785 = vunpack.c.h.b16 %v466
        %v786 = vunpack.c.l.b16 %v467
        %v787 = vunpack.c.h.b16 %v467
        %v788 = vunpack.c.l.b16 %v468
        %v789 = vunpack.c.h.b16 %v468
        %v790 = vunpack.c.l.b16 %v469
        %v791 = vunpack.c.h.b16 %v469
        %v792 = vunpack.c.l.b16 %v470
        %v793 = vunpack.c.h.b16 %v470
        %v794 = vunpack.c.l.b16 %v471
        %v795 = vunpack.c.h.b16 %v471
        %v796 = vunpack.c.l.b16 %v472
        %v797 = vunpack.c.h.b16 %v472
        %v798 = vunpack.c.l.b16 %v473
        %v799 = vunpack.c.h.b16 %v473
        %v800 = vunpack.c.l.b16 %v474
        %v801 = vunpack.c.h.b16 %v474
        %v802 = vunpack.c.l.b16 %v475
        %v803 = vunpack.c.h.b16 %v475
        %v804 = vunpack.c.l.b16 %v476
        %v805 = vunpack.c.h.b16 %v476
        %v806 = vunpack.c.l.b16 %v477
        %v807 = vunpack.c.h.b16 %v477
        %v808 = vunpack.c.l.b16 %v478
        %v809 = vunpack.c.h.b16 %v478
        %v810 = vunpack.c.l.b16 %v479
        %v811 = vunpack.c.h.b16 %v479
        %v812 = vunpack.c.l.b16 %v480
        %v813 = vunpack.c.h.b16 %v480
        %v814 = vunpack.c.l.b16 %v481
        %v815 = vunpack.c.h.b16 %v481
        %v816 = vunpack.c.l.b16 %v482
        %v817 = vunpack.c.h.b16 %v482
        %v818 = vunpack.c.l.b16 %v483
        %v819 = vunpack.c.h.b16 %v483
        %v820 = vunpack.c.l.b16 %v484
        %v821 = vunpack.c.h.b16 %v484
        %v822 = vunpack.c.l.b16 %v485
        %v823 = vunpack.c.h.b16 %v485
        %v824 = vunpack.c.l.b16 %v486
        %v825 = vunpack.c.h.b16 %v486
        %v826 = vunpack.c.l.b16 %v487
        %v827 = vunpack.c.h.b16 %v487
        %v828 = vunpack.c.l.b16 %v488
        %v829 = vunpack.c.h.b16 %v488
        %v830 = vpack.c.b16 %v770, %v766
        %v831 = vpack.c.b16 %v771, %v767
        %v832 = vpack.c.b16 %v772, %v768
        %v833 = vpack.c.b16 %v773, %v769
        %v834 = vpack.c.b16 %v778, %v774
        %v835 = vpack.c.b16 %v779, %v775
        %v836 = vpack.c.b16 %v780, %v776
        %v837 = vpack.c.b16 %v781, %v777
        %v838 = vpack.c.b16 %v786, %v782
        %v839 = vpack.c.b16 %v787, %v783
        %v840 = vpack.c.b16 %v788, %v784
        %v841 = vpack.c.b16 %v789, %v785
        %v842 = vpack.c.b16 %v794, %v790
        %v843 = vpack.c.b16 %v795, %v791
        %v844 = vpack.c.b16 %v796, %v792
        %v845 = vpack.c.b16 %v797, %v793
        %v846 = vpack.c.b16 %v802, %v798
        %v847 = vpack.c.b16 %v803, %v799
        %v848 = vpack.c.b16 %v804, %v800
        %v849 = vpack.c.b16 %v805, %v801
        %v850 = vpack.c.b16 %v810, %v806
        %v851 = vpack.c.b16 %v811, %v807
        %v852 = vpack.c.b16 %v812, %v808
        %v853 = vpack.c.b16 %v813, %v809
        %v854 = vpack.c.b16 %v818, %v814
        %v855 = vpack.c.b16 %v819, %v815
        %v856 = vpack.c.b16 %v820, %v816
        %v857 = vpack.c.b16 %v821, %v817
        %v858 = vpack.c.b16 %v826, %v822
        %v859 = vpack.c.b16 %v827, %v823
        %v860 = vpack.c.b16 %v828, %v824
        %v861 = vpack.c.b16 %v829, %v825
        %894 = vmatpush.bf16.msra.mxu0 %v858
        %895 = vmatpush.bf16.msra.mxu0 %v854
        %896 = vmatpush.bf16.msra.mxu0 %v850
        %897 = vmatpush.bf16.msra.mxu0 %v846
        %898 = vmatpush.bf16.msra.mxu0 %v842
        %899 = vmatpush.bf16.msra.mxu0 %v838
        %900 = vmatpush.bf16.msra.mxu0 %v834
        %901 = vmatpush.bf16.msra.mxu0 %v830
        %902 = vmatmul.bf16.gmra.mxu0 %v456
        %v903 = vpop.f32.mrf.mxu0
        %v904 = vadd.f32 %v692, %v903
        %v905 = vpop.f32.mrf.mxu0
        %906 = vdwg.mxu0
        %907 = vmatpush.bf16.msra.mxu0 %v859
        %908 = vmatpush.bf16.msra.mxu0 %v855
        %909 = vmatpush.bf16.msra.mxu0 %v851
        %910 = vmatpush.bf16.msra.mxu0 %v847
        %911 = vmatpush.bf16.msra.mxu0 %v843
        %912 = vmatpush.bf16.msra.mxu0 %v839
        %913 = vmatpush.bf16.msra.mxu0 %v835
        %914 = vmatpush.bf16.msra.mxu0 %v831
        %915 = vmatmul.bf16.gmra.mxu0 %v456
        %v916 = vpop.f32.mrf.mxu0
        %v917 = vadd.f32 %v705, %v916
        %v918 = vpop.f32.mrf.mxu0
        %919 = vdwg.mxu0
        %920 = vmatpush.bf16.msra.mxu0 %v860
        %921 = vmatpush.bf16.msra.mxu0 %v856
        %922 = vmatpush.bf16.msra.mxu0 %v852
        %923 = vmatpush.bf16.msra.mxu0 %v848
        %924 = vmatpush.bf16.msra.mxu0 %v844
        %925 = vmatpush.bf16.msra.mxu0 %v840
        %926 = vmatpush.bf16.msra.mxu0 %v836
        %927 = vmatpush.bf16.msra.mxu0 %v832
        %928 = vmatmul.bf16.gmra.mxu0 %v456
        %v929 = vpop.f32.mrf.mxu0
        %v930 = vadd.f32 %v718, %v929
        %v931 = vpop.f32.mrf.mxu0
        %932 = vdwg.mxu0
        %933 = vmatpush.bf16.msra.mxu0 %v861
        %934 = vmatpush.bf16.msra.mxu0 %v857
        %935 = vmatpush.bf16.msra.mxu0 %v853
        %936 = vmatpush.bf16.msra.mxu0 %v849
        %937 = vmatpush.bf16.msra.mxu0 %v845
        %938 = vmatpush.bf16.msra.mxu0 %v841
        %939 = vmatpush.bf16.msra.mxu0 %v837
        %940 = vmatpush.bf16.msra.mxu0 %v833
        %941 = vmatmul.bf16.gmra.mxu0 %v456
        %v942 = vpop.f32.mrf.mxu0
        %v943 = vadd.f32 %v731, %v942
        %v944 = vpop.f32.mrf.mxu0
        %945 = vdwg.mxu0
        %v946 = vld [vmem:[%s6] sm:$0xf]
        %v948 = vperm.slane %v946, 0
        %v949 = vperm.slane %v946, 1
        %v950 = vperm.slane %v946, 2
        %v951 = vperm.slane %v946, 3
        %v956 = vadd.f32 %v904, %v948
        %v957 = vadd.f32 %v917, %v949
        %v958 = vadd.f32 %v930, %v950
        %v959 = vadd.f32 %v943, %v951
        %v960 = vxor.u32 %v956, 2147483648
        %v961 = vmul.f32 %v960, 1.442695
        %v962 = vpow.pop %v961
        %v963 = vadd.f32 %v962, 1.0
        %v964 = vrcp.pop %v963
        %v965 = vmul.f32 %v963, %v964
        %v966 = vsub.f32 1.0, %v965
        %v967 = vmul.f32 %v964, %v966
        %v968 = vadd.f32 %v964, %v967
        %vm969 = vweird.f32 %v963
        %vm970 = vweird.f32 %v964
        %vm971 = vmor %vm969, %vm970
        %v972 = vsel %vm971, %v964, %v968
        %v973 = vand.u32 2147483647, %v963
        %vm974 = vcmp.eq.f32.partialorder %v973, 8.507059e+37
        %v975 = vand.u32 %v963, 2147483648
        %v976 = vor.u32 1.1754944e-38, %v975
        %v977 = vsel %vm974, %v976, %v972
        %v978 = vmul.f32 1.0, %v977
        %v979 = vxor.u32 %v957, 2147483648
        %v980 = vmul.f32 %v979, 1.442695
        %v981 = vpow.pop %v980
        %v982 = vadd.f32 %v981, 1.0
        %v983 = vrcp.pop %v982
        %v984 = vmul.f32 %v982, %v983
        %v985 = vsub.f32 1.0, %v984
        %v986 = vmul.f32 %v983, %v985
        %v987 = vadd.f32 %v983, %v986
        %vm988 = vweird.f32 %v982
        %vm989 = vweird.f32 %v983
        %vm990 = vmor %vm988, %vm989
        %v991 = vsel %vm990, %v983, %v987
        %v992 = vand.u32 2147483647, %v982
        %vm993 = vcmp.eq.f32.partialorder %v992, 8.507059e+37
        %v994 = vand.u32 %v982, 2147483648
        %v995 = vor.u32 1.1754944e-38, %v994
        %v996 = vsel %vm993, %v995, %v991
        %v997 = vmul.f32 1.0, %v996
        %v998 = vtanh.pop %v958
        %v999 = vxor.u32 %v959, 2147483648
        %v1000 = vmul.f32 %v999, 1.442695
        %v1001 = vpow.pop %v1000
        %v1002 = vadd.f32 %v1001, 1.0
        %v1003 = vrcp.pop %v1002
        %v1004 = vmul.f32 %v1002, %v1003
        %v1005 = vsub.f32 1.0, %v1004
        %v1006 = vmul.f32 %v1003, %v1005
        %v1007 = vadd.f32 %v1003, %v1006
        %vm1008 = vweird.f32 %v1002
        %vm1009 = vweird.f32 %v1003
        %vm1010 = vmor %vm1008, %vm1009
        %v1011 = vsel %vm1010, %v1003, %v1007
        %v1012 = vand.u32 2147483647, %v1002
        %vm1013 = vcmp.eq.f32.partialorder %v1012, 8.507059e+37
        %v1014 = vand.u32 %v1002, 2147483648
        %v1015 = vor.u32 1.1754944e-38, %v1014
        %v1016 = vsel %vm1013, %v1015, %v1011
        %v1017 = vmul.f32 1.0, %v1016
        %v1018 = vmul.f32 %v997, %v430
        %v1019 = vmul.f32 %v978, %v998
        %v1020 = vadd.f32 %v1018, %v1019
        %v1021 = vtanh.pop %v1020
        %v1022 = vmul.f32 %v1017, %v1021
        %1023 = vst [vmem:[#allocation2] sm:$0xff] %v1022
        %1024 = vst [vmem:[#allocation3] sm:$0xff] %v1020
        %1025 = vst [vmem:[%s414] sm:$0xff] %v455
        %1026 = vst [vmem:[%s421] sm:$0xff] %v1022
        %s1027 = sand.u32 %s212, 1
        %s1028 = scalar_lea.sflag [#allocation6], %s1027
        %s1029 = sand.u32 %s212, 1
        %s1030 = smul.addr %s1029, 8
        %s1031 = scalar_lea.vmem [#allocation13], %s1030
        %s1032 = sand.u32 %s240, 1
        %s1033 = scalar_lea.sflag [#allocation15], %s1032
        %s1034 = sand.u32 %s240, 1
        %s1035 = smul.addr %s1034, 8
        %s1036 = scalar_lea.vmem [#allocation14], %s1035
        // Predicated region
        $region73: #{tpu_custom_call.1} parent=47 // pred_check
          %p1037 = pneg %p222
        $region74: #{tpu_custom_call.1} parent=47 // pred_check_branch
          %1039 = sbr.rel (%p1037) target = $region76
        $region75: #{tpu_custom_call.1} parent=47 // pred_region
          %1041 = vsyncadd %s1028, 0
          %s1042 = sadd.s32 %s35, %s36
          %s1043 = smul.addr %s1042, 8
          %s1044 = scalar_lea.hbm %s7, %s1043
          %s1046 = sshll.u32 %s1031, 4
          %s1047 = int_to_ptr.vmem [resolvable:$true] %s1046
          %s1048 = sshll.u32 %s1044, 4
          %s1049 = int_to_ptr.hbm [resolvable:$true] %s1048
          %1051 = dma.vmem_to_hbm [thread:$0]  %s1047, 128, %s1049, %s1028
        $region76: #{tpu_custom_call.1} parent=47 // pred_fallthru
          _
        // Predicated region
        $region77: #{tpu_custom_call.1} parent=47 // pred_check
          %p1052 = pneg %p250
        $region78: #{tpu_custom_call.1} parent=47 // pred_check_branch
          %1054 = sbr.rel (%p1052) target = $region80
        $region79: #{tpu_custom_call.1} parent=47 // pred_region
          %1056 = vsyncadd %s1033, 0
          %s1057 = sadd.s32 %s35, %s36
          %s1058 = smul.addr %s1057, 8
          %s1059 = scalar_lea.hbm %s8, %s1058
          %s1061 = sshll.u32 %s1036, 4
          %s1062 = int_to_ptr.vmem [resolvable:$true] %s1061
          %s1063 = sshll.u32 %s1059, 4
          %s1064 = int_to_ptr.hbm [resolvable:$true] %s1063
          %1066 = dma.vmem_to_hbm [thread:$0]  %s1062, 128, %s1064, %s1033
        $region80: #{tpu_custom_call.1} parent=47 // pred_fallthru
          _
      $region48: #{tpu_custom_call.1} parent=5 // pred_fallthru
        _
      %p1067 = scmp.le.s32.totalorder 2, %s26
      // Predicated region
      $region81: #{tpu_custom_call.1} parent=5 // pred_check
        %p1068 = pneg %p1067
      $region82: #{tpu_custom_call.1} parent=5 // pred_check_branch
        %1070 = sbr.rel (%p1068) target = $region84
      $region83: #{tpu_custom_call.1} parent=5 // pred_region
        %s1071 = ssub.s32 %s26, 2
        // Predicated region
        $region85: #{tpu_custom_call.1} parent=83 // pred_check
          %p1072 = pneg %p228
        $region86: #{tpu_custom_call.1} parent=83 // pred_check_branch
          %1074 = sbr.rel (%p1072) target = $region88
        $region87: #{tpu_custom_call.1} parent=83 // pred_region
          %s1075 = sand.u32 %s213, 1
          %s1076 = scalar_lea.sflag [#allocation6], %s1075
          %s1077 = sand.u32 %s213, 1
          %s1078 = smul.addr %s1077, 8
          %s1079 = scalar_lea.vmem [#allocation13], %s1078
          %1081 = dma.done %s1076, 128
        $region88: #{tpu_custom_call.1} parent=83 // pred_fallthru
          _
        // Predicated region
        $region89: #{tpu_custom_call.1} parent=83 // pred_check
          %p1082 = pneg %p256
        $region90: #{tpu_custom_call.1} parent=83 // pred_check_branch
          %1084 = sbr.rel (%p1082) target = $region92
        $region91: #{tpu_custom_call.1} parent=83 // pred_region
          %s1085 = sand.u32 %s241, 1
          %s1086 = scalar_lea.sflag [#allocation15], %s1085
          %s1087 = sand.u32 %s241, 1
          %s1088 = smul.addr %s1087, 8
          %s1089 = scalar_lea.vmem [#allocation14], %s1088
          %1091 = dma.done %s1086, 128
        $region92: #{tpu_custom_call.1} parent=83 // pred_fallthru
          _
      $region84: #{tpu_custom_call.1} parent=5 // pred_fallthru
        _
    $region6: #{tpu_custom_call.1} parent=1 // loop_footer
      %s30 = sadd.s32 1, %s26
    $region7: #{tpu_custom_call.1} parent=1 // loop_footer_branch
      %25 = sbr.rel target = $region3
    $region8: #{tpu_custom_call.1} parent=1 // loop_exit
      _
    %1092 = vsyncpa [#allocation5], 1
    %s1093 = scalar_lea.sflag [#allocation5], 1
    %1094 = vsyncpa %s1093, 1
    %1095 = vsyncpa [#allocation8], 1
    %1096 = vsyncpa [#allocation11], 1
    %1097 = vsyncpa [#allocation6], 1
    %s1098 = scalar_lea.sflag [#allocation6], 1
    %1099 = vsyncpa %s1098, 1
    %1100 = vsyncpa [#allocation15], 1
    %s1101 = scalar_lea.sflag [#allocation15], 1
    %1102 = vsyncpa %s1101, 1

</llo_original>
